<compile_context>
chip_gen: v6e
topology: v6e:2x2x1
jax: 0.10.0
libtpu: 0.0.40
codegen_flags: <defaults>
</compile_context>

<pallas_src>
import jax
import jax.numpy as jnp
from jax.experimental import pallas as pl
from jax.experimental.pallas import tpu as pltpu

VOCAB = 128      # value-model vocabulary size (lane aligned)
HIDDEN = 128     # embedding / encoder / pooler width (lane & MXU aligned)
TM_MAX = 2048    # max rows (B*S tokens) per grid step (~3-4 MiB/step VMEM)


def _round_up(x, m):
    return (x + m - 1) // m * m


def _cdiv(a, b):
    return (a + b - 1) // b


def _choose_tile(m):
    """Pick row tile TM and padded row count M_pad.

    Small inputs: one grid step (overhead already minimal).  Large inputs:
    at least 2 grid steps (v7x dual-TensorCore sharding via "parallel"), TM a
    multiple of 256, capped at TM_MAX (well under the 32 MiB VMEM limit).
    """
    m16 = _round_up(max(m, 16), 16)          # bf16 sublane packing: 16-multiples
    if m16 <= 512:
        return m16, m16
    steps = max(2, _cdiv(m16, TM_MAX))
    tm = min(TM_MAX, _round_up(_cdiv(m16, steps), 256))
    return tm, _round_up(m16, tm)


def _value_model_kernel(ids_ref, ew_ref, b1_ref, wp_ref, bp_ref,
                        wc_ref, bc_ref, hid_ref, val_ref):
    # ids:[TM,1] i32 | ew (= emb @ w1):[V,H] bf16 | wp:[H,H] bf16
    # b1,bp:[1,H] f32 | wc:[1,H] bf16 | bc:[1,1] f32
    # hid:[TM,H] bf16 | val:[1,TM] f32 (lane dense)
    ids = ids_ref[...]                                           # [TM, 1]
    tm = ids.shape[0]

    # Embedding gather fused with the encoder weight: exact one-hot MXU matmul
    # against the precomputed emb @ w1 (saves one of the three matmuls).
    lanes = jax.lax.broadcasted_iota(jnp.int32, (tm, VOCAB), 1)  # [TM, V]
    onehot = (ids == lanes).astype(jnp.bfloat16)                 # built in bf16
    h = jnp.tanh(
        jnp.dot(onehot, ew_ref[...], preferred_element_type=jnp.float32)
        + b1_ref[...])                                           # [TM, H] f32

    # Pooler dense + tanh (bf16 matmul, f32 accumulate / bias / tanh).
    p = jnp.tanh(
        jnp.dot(h.astype(jnp.bfloat16), wp_ref[...],
                preferred_element_type=jnp.float32) + bp_ref[...])

    # Classifier (num_labels = 1) as a lane-dense [1, TM] contraction
    # (H contracted with H), avoiding a [TM, 1] masked-store output stream.
    v = jax.lax.dot_general(
        wc_ref[...], p.astype(jnp.bfloat16),
        dimension_numbers=(((1,), (1,)), ((), ())),
        preferred_element_type=jnp.float32) + bc_ref[...]        # [1, TM]

    hid_ref[...] = h.astype(hid_ref.dtype)
    val_ref[...] = v


def value_model_kernel_call(params, ids_flat):
    """Fused embedding -> encoder -> pooler -> classifier over [M] token ids."""
    (M,) = ids_flat.shape
    TM, M_pad = _choose_tile(M)
    num_steps = M_pad // TM

    # The real wrapper re-tokenizes into the value model's vocabulary; since
    # that host-side step is skipped, clamp so OOV ids cannot silently gather
    # a zero embedding row.
    ids = jnp.clip(ids_flat.astype(jnp.int32), 0, VOCAB - 1).reshape(M, 1)
    ids = jnp.pad(ids, ((0, M_pad - M), (0, 0)))

    # One-time exact fold of the embedding into the first encoder matmul
    # (f32 accumulate, then bf16).  Under jit this tiny [128,128]x[128,128]
    # matmul is hoisted / constant-folded by XLA.
    emb_w1 = jnp.dot(params["emb"].astype(jnp.float32),
                     params["w1"].astype(jnp.float32),
                     preferred_element_type=jnp.float32).astype(jnp.bfloat16)

    flops = 2 * M_pad * HIDDEN * (VOCAB + HIDDEN + 1) + 4 * M_pad * HIDDEN
    bytes_accessed = (
        M_pad * 4                                           # ids
        + (VOCAB * HIDDEN + HIDDEN * HIDDEN + HIDDEN) * 2   # bf16 emb_w1, wp, wc
        + (2 * HIDDEN + 1) * 4                              # f32 b1, bp, bc
        + M_pad * HIDDEN * 2 + M_pad * 4)                   # outputs

    hid, val = pl.pallas_call(
        _value_model_kernel,
        out_shape=(
            jax.ShapeDtypeStruct((M_pad, HIDDEN), jnp.bfloat16),
            jax.ShapeDtypeStruct((1, M_pad), jnp.float32),
        ),
        grid=(num_steps,),
        in_specs=[
            pl.BlockSpec((TM, 1), lambda i: (i, 0)),            # ids (row tiled)
            pl.BlockSpec((VOCAB, HIDDEN), lambda i: (0, 0)),    # emb @ w1 (resident)
            pl.BlockSpec((1, HIDDEN), lambda i: (0, 0)),        # b1
            pl.BlockSpec((HIDDEN, HIDDEN), lambda i: (0, 0)),   # wp
            pl.BlockSpec((1, HIDDEN), lambda i: (0, 0)),        # bp
            pl.BlockSpec((1, HIDDEN), lambda i: (0, 0)),        # wc
            pl.BlockSpec((1, 1), lambda i: (0, 0)),             # bc
        ],
        out_specs=(
            pl.BlockSpec((TM, HIDDEN), lambda i: (i, 0)),       # hidden states
            pl.BlockSpec((1, TM), lambda i: (0, i)),            # values (lane dense)
        ),
        compiler_params=pltpu.CompilerParams(
            dimension_semantics=("parallel",),      # shard row tiles across TCs (v7x)
            vmem_limit_bytes=32 * 1024 * 1024,      # safe under v7x's 64 MiB VMEM
        ),
        cost_estimate=pl.CostEstimate(
            flops=flops,
            transcendentals=2 * M_pad * HIDDEN,
            bytes_accessed=bytes_accessed,
        ),
    )(ids, emb_w1, params["b1"], params["wp"], params["bp"],
      params["wc"], params["bc"])
    return hid[:M], val[0, :M]


# ----------------------------------------------------------------------------
# Synthetic DeBERTa-like value model (deterministic init) + wrapper semantics
# ----------------------------------------------------------------------------

def init_params(key):
    k = jax.random.split(key, 4)
    s = 0.05
    return {
        "emb": (s * jax.random.normal(k[0], (VOCAB, HIDDEN), jnp.float32)
                ).astype(jnp.bfloat16),
        "w1": (s * jax.random.normal(k[1], (HIDDEN, HIDDEN), jnp.float32)
               ).astype(jnp.bfloat16),
        "b1": jnp.zeros((1, HIDDEN), jnp.float32),
        "wp": (s * jax.random.normal(k[2], (HIDDEN, HIDDEN), jnp.float32)
               ).astype(jnp.bfloat16),
        "bp": jnp.zeros((1, HIDDEN), jnp.float32),
        "wc": (s * jax.random.normal(k[3], (1, HIDDEN), jnp.float32)
               ).astype(jnp.bfloat16),
        "bc": jnp.zeros((1, 1), jnp.float32),
    }


def ppo_value_model_forward(params, input_ids, attention_mask=None):
    """Mirrors PPOCompatibleValueModel.forward (numeric part)."""
    # TODO(synk): qwen-id -> text decode and DeBERTa re-tokenization are
    # host-side string/tokenizer operations with no Pallas/TPU equivalent;
    # input_ids are assumed to already be in the value model's vocabulary.
    del attention_mask
    B, S = input_ids.shape
    hid, val = value_model_kernel_call(params, input_ids.reshape(-1))
    hidden_states = hid.reshape(B, S, HIDDEN)
    token_values = val.reshape(B, S, 1)
    value_logits = token_values[:, 0, :]     # ContextPooler-style: token 0 -> [B, 1]
    return {"logits": value_logits,
            "token_values": token_values,
            "hidden_states": hidden_states}


def score(params, hidden_states):
    """Mirrors PPOCompatibleValueModel.score: value head on hidden states (glue)."""
    p = jnp.tanh(jnp.dot(hidden_states.astype(jnp.bfloat16), params["wp"],
                         preferred_element_type=jnp.float32) + params["bp"])
    return (jnp.sum(p * params["wc"].astype(jnp.float32), axis=-1, keepdims=True)
            + params["bc"][0, 0])


if __name__ == "__main__":
    key = jax.random.PRNGKey(0)
    k_ids, k_params = jax.random.split(key)

    B, S = 2, 8
    input_ids = jax.random.randint(k_ids, (B, S), 0, VOCAB, dtype=jnp.int32)
    params = init_params(k_params)

    out = jax.jit(ppo_value_model_forward)(params, input_ids)
    jax.block_until_ready(out)

    # pure-JAX reference with the same bf16-weight / f32-accumulate recipe
    def ref_forward(p, ids):
        x = jnp.take(p["emb"], ids.reshape(-1), axis=0).astype(jnp.float32)
        h = jnp.tanh(jnp.dot(x.astype(jnp.bfloat16), p["w1"],
                             preferred_element_type=jnp.float32) + p["b1"])
        q = jnp.tanh(jnp.dot(h.astype(jnp.bfloat16), p["wp"],
                             preferred_element_type=jnp.float32) + p["bp"])
        v = (jnp.sum(q * p["wc"].astype(jnp.float32), axis=-1, keepdims=True)
             + p["bc"][0, 0])
        return h.reshape(B, S, HIDDEN), v.reshape(B, S, 1)

    ref_hid, ref_val = ref_forward(params, input_ids)

    assert out["logits"].shape == (B, 1)
    assert out["token_values"].shape == (B, S, 1)
    assert out["hidden_states"].shape == (B, S, HIDDEN)
    assert jnp.allclose(out["hidden_states"].astype(jnp.float32), ref_hid,
                        atol=2e-2, rtol=2e-2)
    assert jnp.allclose(out["token_values"], ref_val, atol=2e-2, rtol=2e-2)
    assert jnp.allclose(out["logits"], ref_val[:, 0, :], atol=2e-2, rtol=2e-2)

    print("KERNEL_OK")
</pallas_src>

<mosaic_0001>
module attributes {stable_mosaic.version = 11 : i64} {
  func.func @_value_model_kernel(%arg0: i32, %arg1: memref<16x1xi32, #tpu.memory_space<vmem>>, %arg2: memref<128x128xbf16, #tpu.memory_space<vmem>>, %arg3: memref<1x128xf32, #tpu.memory_space<vmem>>, %arg4: memref<128x128xbf16, #tpu.memory_space<vmem>>, %arg5: memref<1x128xf32, #tpu.memory_space<vmem>>, %arg6: memref<1x128xbf16, #tpu.memory_space<vmem>>, %arg7: memref<1x1xf32, #tpu.memory_space<vmem>>, %arg8: memref<16x128xbf16, #tpu.memory_space<vmem>>, %arg9: memref<1x16xf32, #tpu.memory_space<vmem>>) attributes {dimension_semantics = [#tpu.dimension_semantics<parallel>], iteration_bounds = array<i64: 1>, scalar_prefetch = 0 : i64, scratch_operands = 0 : i64, tpu.core_type = #tpu.core_type<tc>, window_params = [{transform_indices = @transform_0, window_bounds = array<i64: 16, 1>}, {pipeline_mode = #tpu.pipeline_mode<synchronous>, transform_indices = @transform_1, window_bounds = array<i64: 128, 128>}, {pipeline_mode = #tpu.pipeline_mode<synchronous>, transform_indices = @transform_2, window_bounds = array<i64: 1, 128>}, {pipeline_mode = #tpu.pipeline_mode<synchronous>, transform_indices = @transform_3, window_bounds = array<i64: 128, 128>}, {pipeline_mode = #tpu.pipeline_mode<synchronous>, transform_indices = @transform_4, window_bounds = array<i64: 1, 128>}, {pipeline_mode = #tpu.pipeline_mode<synchronous>, transform_indices = @transform_5, window_bounds = array<i64: 1, 128>}, {pipeline_mode = #tpu.pipeline_mode<synchronous>, transform_indices = @transform_6, window_bounds = array<i64: 1, 1>}, {transform_indices = @transform_7, window_bounds = array<i64: 16, 128>}, {transform_indices = @transform_8, window_bounds = array<i64: 1, 16>}]} {
    %c0 = arith.constant 0 : index
    %c0_0 = arith.constant 0 : index
    %0 = vector.load %arg1[%c0, %c0_0] : memref<16x1xi32, #tpu.memory_space<vmem>>, vector<16x1xi32>
    %1 = tpu.iota {dimensions = array<i32: 1>} : vector<16x128xi32>
    %2 = vector.broadcast %0 : vector<16x1xi32> to vector<16x128xi32>
    %3 = arith.cmpi eq, %2, %1 : vector<16x128xi32>
    %4 = arith.extui %3 : vector<16x128xi1> to vector<16x128xi32>
    %5 = arith.sitofp %4 : vector<16x128xi32> to vector<16x128xf32>
    %6 = arith.truncf %5 : vector<16x128xf32> to vector<16x128xbf16>
    %c0_1 = arith.constant 0 : index
    %c0_2 = arith.constant 0 : index
    %7 = vector.load %arg2[%c0_1, %c0_2] : memref<128x128xbf16, #tpu.memory_space<vmem>>, vector<128x128xbf16>
    %cst = arith.constant dense<0.000000e+00> : vector<16x128xf32>
    %8 = tpu.matmul %6, %7, %cst {dimension_numbers = #tpu.dot_dimension_numbers<[1], [0], [0], [1], [0, 0, 1, 1], [], []>} : vector<16x128xbf16>, vector<128x128xbf16>, vector<16x128xf32> -> vector<16x128xf32>
    %c0_3 = arith.constant 0 : index
    %c0_4 = arith.constant 0 : index
    %9 = vector.load %arg3[%c0_3, %c0_4] : memref<1x128xf32, #tpu.memory_space<vmem>>, vector<1x128xf32>
    %10 = vector.broadcast %9 : vector<1x128xf32> to vector<16x128xf32>
    %11 = arith.addf %8, %10 : vector<16x128xf32>
    %12 = math.tanh %11 : vector<16x128xf32>
    %13 = arith.truncf %12 : vector<16x128xf32> to vector<16x128xbf16>
    %c0_5 = arith.constant 0 : index
    %c0_6 = arith.constant 0 : index
    %14 = vector.load %arg4[%c0_5, %c0_6] : memref<128x128xbf16, #tpu.memory_space<vmem>>, vector<128x128xbf16>
    %cst_7 = arith.constant dense<0.000000e+00> : vector<16x128xf32>
    %15 = tpu.matmul %13, %14, %cst_7 {dimension_numbers = #tpu.dot_dimension_numbers<[1], [0], [0], [1], [0, 0, 1, 1], [], []>} : vector<16x128xbf16>, vector<128x128xbf16>, vector<16x128xf32> -> vector<16x128xf32>
    %c0_8 = arith.constant 0 : index
    %c0_9 = arith.constant 0 : index
    %16 = vector.load %arg5[%c0_8, %c0_9] : memref<1x128xf32, #tpu.memory_space<vmem>>, vector<1x128xf32>
    %17 = vector.broadcast %16 : vector<1x128xf32> to vector<16x128xf32>
    %18 = arith.addf %15, %17 : vector<16x128xf32>
    %19 = math.tanh %18 : vector<16x128xf32>
    %c0_10 = arith.constant 0 : index
    %c0_11 = arith.constant 0 : index
    %20 = vector.load %arg6[%c0_10, %c0_11] : memref<1x128xbf16, #tpu.memory_space<vmem>>, vector<1x128xbf16>
    %21 = arith.truncf %19 : vector<16x128xf32> to vector<16x128xbf16>
    %cst_12 = arith.constant dense<0.000000e+00> : vector<1x16xf32>
    %22 = tpu.matmul %20, %21, %cst_12 {dimension_numbers = #tpu.dot_dimension_numbers<[1], [1], [0], [0], [0, 0, 1, 0], [], []>} : vector<1x128xbf16>, vector<16x128xbf16>, vector<1x16xf32> -> vector<1x16xf32>
    %c0_13 = arith.constant 0 : index
    %c0_14 = arith.constant 0 : index
    %23 = vector.load %arg7[%c0_13, %c0_14] : memref<1x1xf32, #tpu.memory_space<vmem>>, vector<1x1xf32>
    %24 = vector.broadcast %23 : vector<1x1xf32> to vector<1x16xf32>
    %25 = arith.addf %22, %24 : vector<1x16xf32>
    %26 = arith.truncf %12 : vector<16x128xf32> to vector<16x128xbf16>
    %c0_15 = arith.constant 0 : index
    %c0_16 = arith.constant 0 : index
    %27 = vector.load %arg8[%c0_15, %c0_16] : memref<16x128xbf16, #tpu.memory_space<vmem>>, vector<16x128xbf16>
    tpu.vector_store %arg8[%c0_15, %c0_16], %26 {strides = array<i32>} : memref<16x128xbf16, #tpu.memory_space<vmem>>, vector<16x128xbf16>,
    %c0_17 = arith.constant 0 : index
    %c0_18 = arith.constant 0 : index
    %28 = vector.load %arg9[%c0_17, %c0_18] : memref<1x16xf32, #tpu.memory_space<vmem>>, vector<1x16xf32>
    tpu.vector_store %arg9[%c0_17, %c0_18], %25 {strides = array<i32>} : memref<1x16xf32, #tpu.memory_space<vmem>>, vector<1x16xf32>,
    return
  }
  func.func @transform_0(%arg0: i32) -> (i32, i32) {
    %c0_i32 = arith.constant 0 : i32
    %c0_i32_0 = arith.constant 0 : i32
    return %arg0, %c0_i32 : i32, i32
  }
  func.func @transform_1(%arg0: i32) -> (i32, i32) {
    %c0_i32 = arith.constant 0 : i32
    %c0_i32_0 = arith.constant 0 : i32
    %c0_i32_1 = arith.constant 0 : i32
    return %c0_i32, %c0_i32_0 : i32, i32
  }
  func.func @transform_2(%arg0: i32) -> (i32, i32) {
    %c0_i32 = arith.constant 0 : i32
    %c0_i32_0 = arith.constant 0 : i32
    %c0_i32_1 = arith.constant 0 : i32
    return %c0_i32, %c0_i32_0 : i32, i32
  }
  func.func @transform_3(%arg0: i32) -> (i32, i32) {
    %c0_i32 = arith.constant 0 : i32
    %c0_i32_0 = arith.constant 0 : i32
    %c0_i32_1 = arith.constant 0 : i32
    return %c0_i32, %c0_i32_0 : i32, i32
  }
  func.func @transform_4(%arg0: i32) -> (i32, i32) {
    %c0_i32 = arith.constant 0 : i32
    %c0_i32_0 = arith.constant 0 : i32
    %c0_i32_1 = arith.constant 0 : i32
    return %c0_i32, %c0_i32_0 : i32, i32
  }
  func.func @transform_5(%arg0: i32) -> (i32, i32) {
    %c0_i32 = arith.constant 0 : i32
    %c0_i32_0 = arith.constant 0 : i32
    %c0_i32_1 = arith.constant 0 : i32
    return %c0_i32, %c0_i32_0 : i32, i32
  }
  func.func @transform_6(%arg0: i32) -> (i32, i32) {
    %c0_i32 = arith.constant 0 : i32
    %c0_i32_0 = arith.constant 0 : i32
    %c0_i32_1 = arith.constant 0 : i32
    return %c0_i32, %c0_i32_0 : i32, i32
  }
  func.func @transform_7(%arg0: i32) -> (i32, i32) {
    %c0_i32 = arith.constant 0 : i32
    %c0_i32_0 = arith.constant 0 : i32
    return %arg0, %c0_i32 : i32, i32
  }
  func.func @transform_8(%arg0: i32) -> (i32, i32) {
    %c0_i32 = arith.constant 0 : i32
    %c0_i32_0 = arith.constant 0 : i32
    return %c0_i32, %arg0 : i32, i32
  }
}

</mosaic_0001>

<llo_original>
// kernel: squeeze.2
$region0: #{squeeze.2}
  %s0 = inlined_call_operand.vmem [shape: f32[16], index: 0, kind: input, shape index: {}]
  %s1 = inlined_call_operand.vmem [shape: f32[2,8,1], index: 1, kind: output, shape index: {}]
  $region1: #{squeeze.2} parent=0
    #allocation0 [shape = 'u8[4096]{0}', space=vmem, size = 0x1000, scoped, tag = 'scoped mem for output reshape']
    #allocation1 [shape = 'u8[4096]{0}', space=vmem, size = 0x1000, scoped, tag = 'scoped mem for input reshape']
    %s3 = sshll.u32 1, 1
    %s4 = ssub.s32 %s3, 1
    %v5 = vld [vmem:[%s0] sm:%s4]
    %6 = vst [vmem:[#allocation1] sm:%s4] %v5
    %v7 = vld [vmem:[#allocation1] sm:$0x1]
    %vm8 = vcmask 64512
    %9 = vst.msk [vmem:[#allocation0] sm:$0x1] %vm8, %v7
    %v10 = vld [vmem:[#allocation1] sm:$0x1]
    %11 = vrot.lane.b32.xlu0 %v10, 120
    %v12 = vpop.permute.xlu0 %11
    %vm13 = vcmask 64512
    %s14 = scalar_lea.vmem [#allocation0], 1
    %15 = vst.msk [vmem:[%s14] sm:$0x1] %vm13, %v12
    %s17 = sshll.u32 1, 2
    %s18 = ssub.s32 %s17, 1
    %v20 = vld [vmem:[#allocation0] sm:%s18]
    %s21 = sshll.u32 1, 2
    %s22 = ssub.s32 %s21, 1
    %23 = vst [vmem:[%s1] sm:%s22] %v20

// kernel: ppo_value_model_forward.1
$region0: #{ppo_value_model_forward.1}
  #allocation0 [shape = 'u32[]', space=smem, size = 0x4, offset = 0x4, fixed_abs, tag = 'smem constant byte address 0x4 - core index']
  #allocation1 [shape = 'u32[144,128]{1,0:T(1,128)}', space=vmem, size = 0x12000, scoped, tag = 'internal scratch']
  #allocation2 [shape = 'f32[1,1]{1,0:T(1,128)S(1)}', space=vmem, size = 0x200, scoped, tag = 'scoped memory for ppo_value_model_forward.1']
  %s0 = inlined_call_operand.vmem [shape: s32[16,1], index: 0, kind: input, shape index: {}]
  %s1 = inlined_call_operand.vmem [shape: bf16[128,128], index: 1, kind: input, shape index: {}]
  %s2 = inlined_call_operand.vmem [shape: f32[1,128], index: 2, kind: input, shape index: {}]
  %s3 = inlined_call_operand.vmem [shape: bf16[128,128], index: 3, kind: input, shape index: {}]
  %s4 = inlined_call_operand.vmem [shape: f32[1,128], index: 4, kind: input, shape index: {}]
  %s5 = inlined_call_operand.vmem [shape: bf16[1,128], index: 5, kind: input, shape index: {}]
  %s6 = inlined_call_operand.<no memory space> [shape: f32[1,1], index: 6, kind: input, shape index: {}]
  %s7 = inlined_call_operand.hbm [shape: bf16[16,128], index: 7, kind: output, shape index: {0}]
  %s8 = inlined_call_operand.vmem [shape: f32[1,16], index: 8, kind: output, shape index: {1}]
  %9 = xla_tuple %s7, %s8
  %s10 = sld [smem:[#allocation0]]
  $region46: #{ppo_value_model_forward.1} parent=0
    _
  %s12 = ssub.s32 1, %s10
  %s13 = scalar_select 0, %s12, %s10
  %v14 = vstv %s6
  %15 = vst [vmem:[#allocation2] sm:$0x1] %v14
  $region1: #{ppo_value_model_forward.1} parent=0
    #allocation3 [shape = 'u8[4096]{0}', space=vmem, size = 0x1000, scoped, tag = 'output window, operand 0, single buffered']
    #allocation4 [shape = 's32[1]{0}', space=sflag, size = 0x4, scoped, tag = 'scoped memory for ppo_value_model_forward.1']
    %16 = vsyncpa [#allocation4], 0
    // Predicated region
    $region2: #{ppo_value_model_forward.1} parent=1 // pred_check
      _
    $region3: #{ppo_value_model_forward.1} parent=1 // pred_check_branch
      %18 = sbr.rel (0) target = $region5
    $region4: #{ppo_value_model_forward.1} parent=1 // pred_region
      _
    $region5: #{ppo_value_model_forward.1} parent=1 // pred_fallthru
      _
    // Predicated region
    $region6: #{ppo_value_model_forward.1} parent=1 // pred_check
      _
    $region7: #{ppo_value_model_forward.1} parent=1 // pred_check_branch
      %20 = sbr.rel (0) target = $region9
    $region8: #{ppo_value_model_forward.1} parent=1 // pred_region
      _
    $region9: #{ppo_value_model_forward.1} parent=1 // pred_fallthru
      _
    // Predicated region
    $region10: #{ppo_value_model_forward.1} parent=1 // pred_check
      _
    $region11: #{ppo_value_model_forward.1} parent=1 // pred_check_branch
      %22 = sbr.rel (0) target = $region13
    $region12: #{ppo_value_model_forward.1} parent=1 // pred_region
      _
    $region13: #{ppo_value_model_forward.1} parent=1 // pred_fallthru
      _
    // Predicated region
    $region14: #{ppo_value_model_forward.1} parent=1 // pred_check
      _
    $region15: #{ppo_value_model_forward.1} parent=1 // pred_check_branch
      %24 = sbr.rel (0) target = $region17
    $region16: #{ppo_value_model_forward.1} parent=1 // pred_region
      _
    $region17: #{ppo_value_model_forward.1} parent=1 // pred_fallthru
      _
    // Predicated region
    $region18: #{ppo_value_model_forward.1} parent=1 // pred_check
      _
    $region19: #{ppo_value_model_forward.1} parent=1 // pred_check_branch
      %26 = sbr.rel (0) target = $region21
    $region20: #{ppo_value_model_forward.1} parent=1 // pred_region
      _
    $region21: #{ppo_value_model_forward.1} parent=1 // pred_fallthru
      _
    // Predicated region
    $region22: #{ppo_value_model_forward.1} parent=1 // pred_check
      _
    $region23: #{ppo_value_model_forward.1} parent=1 // pred_check_branch
      %28 = sbr.rel (0) target = $region25
    $region24: #{ppo_value_model_forward.1} parent=1 // pred_region
      _
    $region25: #{ppo_value_model_forward.1} parent=1 // pred_fallthru
      _
    // Predicated region
    $region26: #{ppo_value_model_forward.1} parent=1 // pred_check
      _
    $region27: #{ppo_value_model_forward.1} parent=1 // pred_check_branch
      %30 = sbr.rel (0) target = $region29
    $region28: #{ppo_value_model_forward.1} parent=1 // pred_region
      _
    $region29: #{ppo_value_model_forward.1} parent=1 // pred_fallthru
      _
    %v32 = vld [vmem:[%s0] sm:$0xff]
    %v33 = vld [vmem:[%s0 + $0x8] sm:$0xff]
    %v34 = vlaneseq
    %v35 = vand.u32 %v34, 127
    %36 = vset.pattern.permute.xlu0 0
    %37 = vperm.xlu0 %36, %v32
    %v38 = vpop.permute.xlu0 %37
    %39 = vset.pattern.permute.xlu0 0
    %40 = vperm.xlu0 %39, %v33
    %v41 = vpop.permute.xlu0 %40
    %vm42 = vcmp.eq.s32.totalorder %v38, %v35
    %vm43 = vcmp.eq.s32.totalorder %v41, %v35
    %v44 = vsel %vm42, 1, 0
    %v45 = vsel %vm43, 1, 0
    %v46 = vcvt.s32.f32 %v44
    %v47 = vcvt.s32.f32 %v45
    %v48 = vpack.c.bf16 %v47, %v46
    %v49 = vld [vmem:[%s1] sm:$0xf]
    %v50 = vld [vmem:[%s1 + $0x4] sm:$0xf]
    %v51 = vld [vmem:[%s1 + $0x8] sm:$0xf]
    %v52 = vld [vmem:[%s1 + $0xc] sm:$0xf]
    %v53 = vld [vmem:[%s1 + $0x10] sm:$0xf]
    %v54 = vld [vmem:[%s1 + $0x14] sm:$0xf]
    %v55 = vld [vmem:[%s1 + $0x18] sm:$0xf]
    %v56 = vld [vmem:[%s1 + $0x1c] sm:$0xf]
    %v57 = vld [vmem:[%s1 + $0x20] sm:$0xf]
    %v58 = vld [vmem:[%s1 + $0x24] sm:$0xf]
    %v59 = vld [vmem:[%s1 + $0x28] sm:$0xf]
    %v60 = vld [vmem:[%s1 + $0x2c] sm:$0xf]
    %v61 = vld [vmem:[%s1 + $0x30] sm:$0xf]
    %v62 = vld [vmem:[%s1 + $0x34] sm:$0xf]
    %v63 = vld [vmem:[%s1 + $0x38] sm:$0xf]
    %v64 = vld [vmem:[%s1 + $0x3c] sm:$0xf]
    %v65 = vld [vmem:[%s2] sm:$0x1]
    %v67 = vlaneseq
    %v68 = vshrl.u32 %v67, 7
    %v69 = vsub.s32 0, %v68
    %v70 = vrot.slane %v65, %v69
    %v88 = vunpack.c.l.b16 %v49
    %v89 = vunpack.c.l.b16 %v50
    %v90 = vunpack.c.l.b16 %v51
    %v91 = vunpack.c.l.b16 %v52
    %v92 = vunpack.c.l.b16 %v53
    %v93 = vunpack.c.l.b16 %v54
    %v94 = vunpack.c.l.b16 %v55
    %v95 = vunpack.c.l.b16 %v56
    %v96 = vunpack.c.l.b16 %v57
    %v97 = vunpack.c.l.b16 %v58
    %v98 = vunpack.c.l.b16 %v59
    %v99 = vunpack.c.l.b16 %v60
    %v100 = vunpack.c.l.b16 %v61
    %v101 = vunpack.c.l.b16 %v62
    %v102 = vunpack.c.l.b16 %v63
    %v103 = vunpack.c.l.b16 %v64
    %v104 = vpack.c.b16 %v89, %v88
    %v105 = vpack.c.b16 %v91, %v90
    %v106 = vpack.c.b16 %v93, %v92
    %v107 = vpack.c.b16 %v95, %v94
    %v108 = vpack.c.b16 %v97, %v96
    %v109 = vpack.c.b16 %v99, %v98
    %v110 = vpack.c.b16 %v101, %v100
    %v111 = vpack.c.b16 %v103, %v102
    %120 = vmatprep.subr.bf16.mxu0 0
    %121 = vmatpush1.bf16.msra.mxu0 %v111
    %122 = vmatprep.subr.bf16.mxu0 0
    %123 = vmatpush1.bf16.msra.mxu0 %v110
    %124 = vmatprep.subr.bf16.mxu0 0
    %125 = vmatpush1.bf16.msra.mxu0 %v109
    %126 = vmatprep.subr.bf16.mxu0 0
    %127 = vmatpush1.bf16.msra.mxu0 %v108
    %128 = vmatprep.subr.bf16.mxu0 0
    %129 = vmatpush1.bf16.msra.mxu0 %v107
    %130 = vmatprep.subr.bf16.mxu0 0
    %131 = vmatpush1.bf16.msra.mxu0 %v106
    %132 = vmatprep.subr.bf16.mxu0 0
    %133 = vmatpush1.bf16.msra.mxu0 %v105
    %134 = vmatprep.subr.bf16.mxu0 0
    %135 = vmatpush1.bf16.msra.mxu0 %v104
    %136 = vmatprep.subr.bf16.mxu0 0
    %137 = vmatpush2.bf16.msra.mxu0 0
    %138 = vmatprep.subr.bf16.mxu0 0
    %139 = vmatpush2.bf16.msra.mxu0 0
    %140 = vmatprep.subr.bf16.mxu0 0
    %141 = vmatpush2.bf16.msra.mxu0 0
    %142 = vmatprep.subr.bf16.mxu0 0
    %143 = vmatpush2.bf16.msra.mxu0 0
    %144 = vmatprep.subr.bf16.mxu0 0
    %145 = vmatpush2.bf16.msra.mxu0 0
    %146 = vmatprep.subr.bf16.mxu0 0
    %147 = vmatpush2.bf16.msra.mxu0 0
    %148 = vmatprep.subr.bf16.mxu0 0
    %149 = vmatpush2.bf16.msra.mxu0 0
    %150 = vmatprep.subr.bf16.mxu0 0
    %151 = vmatpush2.bf16.msra.mxu0 0
    %152 = vmatprep.mubr.bf16.mxu0 0
    %153 = vmatmul.mubr.bf16.gmra.mxu0 %v48
    %v154 = vpop.f32.mrf.mxu0
    %v155 = vadd.f32 %v70, %v154
    %v156 = vpop.f32.mrf.mxu0
    %v157 = vpop.f32.mrf.mxu0
    %v158 = vadd.f32 %v70, %v157
    %v159 = vpop.f32.mrf.mxu0
    %160 = vdwg.mxu0
    %v161 = vtanh.pop %v155
    %v162 = vtanh.pop %v158
    %v163 = vpack.c.bf16 %v162, %v161
    %v164 = vld [vmem:[%s3] sm:$0xf]
    %v165 = vld [vmem:[%s3 + $0x4] sm:$0xf]
    %v166 = vld [vmem:[%s3 + $0x8] sm:$0xf]
    %v167 = vld [vmem:[%s3 + $0xc] sm:$0xf]
    %v168 = vld [vmem:[%s3 + $0x10] sm:$0xf]
    %v169 = vld [vmem:[%s3 + $0x14] sm:$0xf]
    %v170 = vld [vmem:[%s3 + $0x18] sm:$0xf]
    %v171 = vld [vmem:[%s3 + $0x1c] sm:$0xf]
    %v172 = vld [vmem:[%s3 + $0x20] sm:$0xf]
    %v173 = vld [vmem:[%s3 + $0x24] sm:$0xf]
    %v174 = vld [vmem:[%s3 + $0x28] sm:$0xf]
    %v175 = vld [vmem:[%s3 + $0x2c] sm:$0xf]
    %v176 = vld [vmem:[%s3 + $0x30] sm:$0xf]
    %v177 = vld [vmem:[%s3 + $0x34] sm:$0xf]
    %v178 = vld [vmem:[%s3 + $0x38] sm:$0xf]
    %v179 = vld [vmem:[%s3 + $0x3c] sm:$0xf]
    %v180 = vld [vmem:[%s4] sm:$0x1]
    %v182 = vlaneseq
    %v183 = vshrl.u32 %v182, 7
    %v184 = vsub.s32 0, %v183
    %v185 = vrot.slane %v180, %v184
    %v203 = vunpack.c.l.b16 %v164
    %v204 = vunpack.c.l.b16 %v165
    %v205 = vunpack.c.l.b16 %v166
    %v206 = vunpack.c.l.b16 %v167
    %v207 = vunpack.c.l.b16 %v168
    %v208 = vunpack.c.l.b16 %v169
    %v209 = vunpack.c.l.b16 %v170
    %v210 = vunpack.c.l.b16 %v171
    %v211 = vunpack.c.l.b16 %v172
    %v212 = vunpack.c.l.b16 %v173
    %v213 = vunpack.c.l.b16 %v174
    %v214 = vunpack.c.l.b16 %v175
    %v215 = vunpack.c.l.b16 %v176
    %v216 = vunpack.c.l.b16 %v177
    %v217 = vunpack.c.l.b16 %v178
    %v218 = vunpack.c.l.b16 %v179
    %v219 = vpack.c.b16 %v204, %v203
    %v220 = vpack.c.b16 %v206, %v205
    %v221 = vpack.c.b16 %v208, %v207
    %v222 = vpack.c.b16 %v210, %v209
    %v223 = vpack.c.b16 %v212, %v211
    %v224 = vpack.c.b16 %v214, %v213
    %v225 = vpack.c.b16 %v216, %v215
    %v226 = vpack.c.b16 %v218, %v217
    %235 = vmatprep.subr.bf16.mxu0 0
    %236 = vmatpush1.bf16.msra.mxu0 %v226
    %237 = vmatprep.subr.bf16.mxu0 0
    %238 = vmatpush1.bf16.msra.mxu0 %v225
    %239 = vmatprep.subr.bf16.mxu0 0
    %240 = vmatpush1.bf16.msra.mxu0 %v224
    %241 = vmatprep.subr.bf16.mxu0 0
    %242 = vmatpush1.bf16.msra.mxu0 %v223
    %243 = vmatprep.subr.bf16.mxu0 0
    %244 = vmatpush1.bf16.msra.mxu0 %v222
    %245 = vmatprep.subr.bf16.mxu0 0
    %246 = vmatpush1.bf16.msra.mxu0 %v221
    %247 = vmatprep.subr.bf16.mxu0 0
    %248 = vmatpush1.bf16.msra.mxu0 %v220
    %249 = vmatprep.subr.bf16.mxu0 0
    %250 = vmatpush1.bf16.msra.mxu0 %v219
    %251 = vmatprep.subr.bf16.mxu0 0
    %252 = vmatpush2.bf16.msra.mxu0 0
    %253 = vmatprep.subr.bf16.mxu0 0
    %254 = vmatpush2.bf16.msra.mxu0 0
    %255 = vmatprep.subr.bf16.mxu0 0
    %256 = vmatpush2.bf16.msra.mxu0 0
    %257 = vmatprep.subr.bf16.mxu0 0
    %258 = vmatpush2.bf16.msra.mxu0 0
    %259 = vmatprep.subr.bf16.mxu0 0
    %260 = vmatpush2.bf16.msra.mxu0 0
    %261 = vmatprep.subr.bf16.mxu0 0
    %262 = vmatpush2.bf16.msra.mxu0 0
    %263 = vmatprep.subr.bf16.mxu0 0
    %264 = vmatpush2.bf16.msra.mxu0 0
    %265 = vmatprep.subr.bf16.mxu0 0
    %266 = vmatpush2.bf16.msra.mxu0 0
    %267 = vmatprep.mubr.bf16.mxu0 0
    %268 = vmatmul.mubr.bf16.gmra.mxu0 %v163
    %v269 = vpop.f32.mrf.mxu0
    %v270 = vadd.f32 %v185, %v269
    %v271 = vpop.f32.mrf.mxu0
    %v272 = vpop.f32.mrf.mxu0
    %v273 = vadd.f32 %v185, %v272
    %v274 = vpop.f32.mrf.mxu0
    %275 = vdwg.mxu0
    %v276 = vtanh.pop %v270
    %v277 = vtanh.pop %v273
    %v278 = vld [vmem:[%s5] sm:$0x1]
    %v279 = vpack.c.bf16 %v277, %v276
    %v280 = vld [vmem:[#allocation2] sm:$0x1]
    %282 = vset.pattern.permute.xlu0 0
    %283 = vperm.xlu0 %282, %v280
    %v284 = vpop.permute.xlu0 %283
    %v286 = vlaneseq
    %v287 = vshrl.u32 %v286, 7
    %v288 = vsub.s32 0, %v287
    %v289 = vrot.slane %v284, %v288
    %290 = vmatprep.subr.bf16.mxu0 0
    %291 = vmatpush1.bf16.xpose.msra.mxu0 0
    %292 = vmatprep.subr.bf16.mxu0 0
    %293 = vmatpush1.bf16.xpose.msra.mxu0 0
    %294 = vmatprep.subr.bf16.mxu0 0
    %295 = vmatpush1.bf16.xpose.msra.mxu0 0
    %296 = vmatprep.subr.bf16.mxu0 0
    %297 = vmatpush1.bf16.xpose.msra.mxu0 0
    %298 = vmatprep.subr.bf16.mxu0 0
    %299 = vmatpush1.bf16.xpose.msra.mxu0 0
    %300 = vmatprep.subr.bf16.mxu0 0
    %301 = vmatpush1.bf16.xpose.msra.mxu0 0
    %302 = vmatprep.subr.bf16.mxu0 0
    %303 = vmatpush1.bf16.xpose.msra.mxu0 0
    %304 = vmatprep.subr.bf16.mxu0 0
    %305 = vmatpush1.bf16.xpose.msra.mxu0 %v279
    %306 = vmatprep.subr.bf16.mxu0 0
    %307 = vmatpush2.bf16.xpose.msra.mxu0 0
    %308 = vmatprep.subr.bf16.mxu0 0
    %309 = vmatpush2.bf16.xpose.msra.mxu0 0
    %310 = vmatprep.subr.bf16.mxu0 0
    %311 = vmatpush2.bf16.xpose.msra.mxu0 0
    %312 = vmatprep.subr.bf16.mxu0 0
    %313 = vmatpush2.bf16.xpose.msra.mxu0 0
    %314 = vmatprep.subr.bf16.mxu0 0
    %315 = vmatpush2.bf16.xpose.msra.mxu0 0
    %316 = vmatprep.subr.bf16.mxu0 0
    %317 = vmatpush2.bf16.xpose.msra.mxu0 0
    %318 = vmatprep.subr.bf16.mxu0 0
    %319 = vmatpush2.bf16.xpose.msra.mxu0 0
    %320 = vmatprep.subr.bf16.mxu0 0
    %321 = vmatpush2.bf16.xpose.msra.mxu0 0
    %322 = vmatprep.mubr.bf16.mxu0 0
    %323 = vmatmul.mubr.bf16.gmra.mxu0 %v278
    %v324 = vpop.f32.mrf.mxu0
    %v325 = vadd.f32 %v289, %v324
    %v326 = vpop.f32.mrf.mxu0
    %v327 = vpop.f32.mrf.mxu0
    %v328 = vpop.f32.mrf.mxu0
    %329 = vdwg.mxu0
    %v331 = vunpack.c.l.b16 %v163
    %v332 = vunpack.c.h.b16 %v163
    %v333 = vpack.c.b16 %v331, %v331
    %v334 = vpack.c.b16 %v332, %v332
    %337 = vst [vmem:[#allocation3] sm:$0xf] %v333
    %338 = vst [vmem:[#allocation3 + $0x4] sm:$0xf] %v334
    %vm339 = vcmask 122880
    %340 = vst.msk [vmem:[%s8] sm:$0x1] %vm339, %v325
    // Predicated region
    $region30: #{ppo_value_model_forward.1} parent=1 // pred_check
      _
    $region31: #{ppo_value_model_forward.1} parent=1 // pred_check_branch
      %342 = sbr.rel (0) target = $region33
    $region32: #{ppo_value_model_forward.1} parent=1 // pred_region
      %s344 = ssub.s32 128, 128
      %345 = vsyncadd [#allocation4], %s344
      %s346 = sshll.u32 [#allocation3], 4
      %s347 = int_to_ptr.vmem [resolvable:$true] %s346
      %352 = dma.vmem_to_hbm [thread:$0]  %s347, 128, %s7, [#allocation4], 64, 64, 4
    $region33: #{ppo_value_model_forward.1} parent=1 // pred_fallthru
      _
    // Predicated region
    $region34: #{ppo_value_model_forward.1} parent=1 // pred_check
      _
    $region35: #{ppo_value_model_forward.1} parent=1 // pred_check_branch
      %354 = sbr.rel (0) target = $region37
    $region36: #{ppo_value_model_forward.1} parent=1 // pred_region
      _
    $region37: #{ppo_value_model_forward.1} parent=1 // pred_fallthru
      _
    // Predicated region
    $region38: #{ppo_value_model_forward.1} parent=1 // pred_check
      _
    $region39: #{ppo_value_model_forward.1} parent=1 // pred_check_branch
      %356 = sbr.rel (0) target = $region41
    $region40: #{ppo_value_model_forward.1} parent=1 // pred_region
      %357 = dma.done [#allocation4], 128
    $region41: #{ppo_value_model_forward.1} parent=1 // pred_fallthru
      _
    // Predicated region
    $region42: #{ppo_value_model_forward.1} parent=1 // pred_check
      _
    $region43: #{ppo_value_model_forward.1} parent=1 // pred_check_branch
      %359 = sbr.rel (0) target = $region45
    $region44: #{ppo_value_model_forward.1} parent=1 // pred_region
      _
    $region45: #{ppo_value_model_forward.1} parent=1 // pred_fallthru
      _
    %360 = vsyncpa [#allocation4], 1

</llo_original>
